<compile_context>
chip_gen: v7x
topology: tpu7x:2x2x1
jax: 0.10.0
libtpu: 0.0.40
codegen_flags: <defaults>
</compile_context>

<pallas_src>
import functools

import jax
import jax.numpy as jnp
from jax.experimental import pallas as pl
from jax.experimental.pallas import tpu as pltpu

_LANE = 128


def _round_up(n, m):
    return ((n + m - 1) // m) * m


def _cdiv(a, b):
    return (a + b - 1) // b


# --------------------------------------------------------------------------- #
# Kernel
# --------------------------------------------------------------------------- #
def _encoder_kernel(num_linear, compute_dtype, *refs):
    # refs = (x_ref, w0, b0, w1, b1, ..., wL, bL, o_ref)
    x_ref = refs[0]
    o_ref = refs[-1]
    params = refs[1:-1]

    h = x_ref[...]                                   # (TM, input_size)
    for li in range(num_linear):
        w_ref = params[2 * li]
        b_ref = params[2 * li + 1]
        acc = jnp.dot(h.astype(compute_dtype), w_ref[...],
                      preferred_element_type=jnp.float32)   # MXU, f32 accumulate
        acc = acc + b_ref[...]                       # bias add in f32
        if li < num_linear - 1:                      # ReLU after all but last layer
            acc = jnp.maximum(acc, 0.0)
        h = acc
    o_ref[...] = h.astype(o_ref.dtype)


# --------------------------------------------------------------------------- #
# One-time parameter preparation (hoisted out of the per-call path)
# --------------------------------------------------------------------------- #
def prepare_encoder_params(weights, biases, *, input_size,
                           compute_dtype=jnp.float32, lane=None):
    """Pad/cast the Linear parameters once for the Pallas kernel.

    Hidden dims are zero-padded to a lane multiple (128; 256 when the hidden
    size is >= 256 to better fill a 256x256 MXU).  input_size is NOT padded —
    the first/last weight blocks use the full array dims.  Padded weight
    rows/cols and bias entries are exactly zero, so results are unchanged.

    Returns (param_args, padded_dims, real_dims).
    """
    num_linear = len(weights)
    assert num_linear >= 1 and len(biases) == num_linear
    dims = [int(weights[0].shape[0])] + [int(w.shape[1]) for w in weights]
    assert dims[0] == input_size, "first Linear fan_in must equal input_size"
    assert dims[-1] == input_size, "last Linear fan_out must equal input_size"
    for i in range(num_linear):
        assert tuple(weights[i].shape) == (dims[i], dims[i + 1]), \
            "inconsistent Linear chain"
        assert tuple(biases[i].shape) == (dims[i + 1],), "bad bias shape"

    if lane is None:
        hidden_max = max(dims[1:-1]) if num_linear > 1 else dims[0]
        lane = 256 if hidden_max >= 256 else _LANE
    pdims = [dims[0]] + [_round_up(d, lane) for d in dims[1:-1]] + [dims[-1]]

    param_args = []
    for i, (w, b) in enumerate(zip(weights, biases)):
        fi, fo = dims[i], dims[i + 1]
        fip, fop = pdims[i], pdims[i + 1]
        wp = jnp.zeros((fip, fop), jnp.float32).at[:fi, :fo].set(
            jnp.asarray(w, jnp.float32))
        bp = jnp.zeros((1, fop), jnp.float32).at[0, :fo].set(
            jnp.asarray(b, jnp.float32))
        param_args.append(wp.astype(compute_dtype))   # weights in compute dtype
        param_args.append(bp)                         # bias stays f32
    return tuple(param_args), tuple(pdims), tuple(dims)


# --------------------------------------------------------------------------- #
# Helpers
# --------------------------------------------------------------------------- #
def _vmem_capacity_bytes():
    try:
        info = pltpu.get_tpu_info()
        for name in ("vmem_capacity_bytes", "vmem_size_bytes", "vmem_bytes"):
            v = getattr(info, name, None)
            if v:
                return int(v)
    except Exception:
        pass
    return 64 << 20     # v7x has the smallest VMEM; safe fallback for all chips


def _make_spec(shape, index_map, buffers=None):
    """BlockSpec with an optional requested buffer count (falls back cleanly)."""
    if buffers is not None and hasattr(pl, "Buffered"):
        try:
            return pl.BlockSpec(shape, index_map,
                                pipeline_mode=pl.Buffered(buffers))
        except Exception:
            pass
    return pl.BlockSpec(shape, index_map)


# --------------------------------------------------------------------------- #
# Forward wrapper
# --------------------------------------------------------------------------- #
def encoder_forward(x_nchw, params, *, input_size,
                    compute_dtype=jnp.float32, target_tile_bytes=4 << 20,
                    dimension_semantics=("parallel",)):
    """Encoder forward (non-mnist branch) on an NCHW tensor.

    params = prepare_encoder_params(...).  Returns (B, C, H, W) float32.
    On v7x, pass dimension_semantics=(pltpu.CORE_PARALLEL,) (with >= 2 even
    grid steps) to shard the row axis across the two TensorCores.
    """
    param_args, pdims, dims = params
    B, C, H, W = x_nchw.shape
    assert H * W == input_size and pdims[0] == input_size
    M = B * C
    num_linear = len(param_args) // 2
    itm = jnp.dtype(compute_dtype).itemsize
    is_bf16 = jnp.dtype(compute_dtype) == jnp.dtype(jnp.bfloat16)
    row_align = 16 if is_bf16 else 8

    # One-pass reshape + cast (no intermediate f32 copy, no lane padding).
    x2d = jnp.asarray(x_nchw).reshape(M, input_size).astype(compute_dtype)

    # Resident parameter footprint (weights in compute dtype, bias f32).
    w_bytes = sum(pdims[i] * pdims[i + 1] * itm + pdims[i + 1] * 4
                  for i in range(num_linear))
    hidden_pad_max = max(pdims[1:])

    cap = _vmem_capacity_bytes()
    budget = max(16 << 20, min(cap - (16 << 20), int(cap * 0.8)))

    def choose_tm(w_buffers):
        resident = w_buffers * w_bytes
        want = max(row_align, target_tile_bytes // max(1, input_size * itm))
        if want >= M:
            return M, M                          # single step, full-row block
        n_steps = _cdiv(M, want)
        while True:
            tm = _round_up(_cdiv(M, n_steps), row_align)
            if tm >= M:
                return M, M
            foot = (resident
                    + 2 * tm * input_size * itm      # x tile, 2-deep pipeline
                    + 2 * tm * input_size * 4        # f32 out tile, 2-deep
                    + 3 * tm * hidden_pad_max * 4)   # live f32 intermediates
            if foot <= budget or tm <= row_align:
                return tm, _round_up(M, tm)
            n_steps += 1

    def run(single_buffer_weights):
        w_buffers = 1 if single_buffer_weights else 2
        tm, M_pad = choose_tm(w_buffers)
        xin = x2d if M_pad == M else jnp.pad(x2d, ((0, M_pad - M), (0, 0)))

        row_map = lambda i: (i, 0)
        full_map = lambda i: (0, 0)

        in_specs = [pl.BlockSpec((tm, input_size), row_map)]   # default 2-deep
        wb = 1 if single_buffer_weights else None
        for li in range(num_linear):
            fip, fop = pdims[li], pdims[li + 1]
            in_specs.append(_make_spec((fip, fop), full_map, buffers=wb))
            in_specs.append(_make_spec((1, fop), full_map, buffers=wb))
        out_spec = pl.BlockSpec((tm, input_size), row_map)

        foot = (w_buffers * w_bytes
                + 2 * tm * input_size * itm + 2 * tm * input_size * 4
                + 3 * tm * hidden_pad_max * 4)
        vmem_limit = int(min(max(budget, foot + (4 << 20)),
                             max(cap - (8 << 20), 16 << 20)))

        # Advisory cost estimate with real (unpadded) work.
        flops = 2 * M * sum(dims[i] * dims[i + 1] for i in range(num_linear))
        bytes_accessed = M * input_size * itm + M * input_size * 4 + w_bytes
        cost = pl.CostEstimate(flops=flops, transcendentals=0,
                               bytes_accessed=bytes_accessed)

        kernel = functools.partial(_encoder_kernel, num_linear, compute_dtype)
        out2d = pl.pallas_call(
            kernel,
            out_shape=jax.ShapeDtypeStruct((M_pad, input_size), jnp.float32),
            grid_spec=pltpu.PrefetchScalarGridSpec(
                num_scalar_prefetch=0,
                grid=(M_pad // tm,),
                in_specs=in_specs,
                out_specs=out_spec,
            ),
            compiler_params=pltpu.CompilerParams(
                dimension_semantics=dimension_semantics,
                vmem_limit_bytes=vmem_limit,
            ),
            cost_estimate=cost,
        )(xin, *param_args)
        return out2d if M_pad == M else out2d[:M]

    try:
        out2d = jax.block_until_ready(run(True))     # single-buffered weights
    except Exception:
        out2d = run(False)                           # fallback: default buffering

    # reshape(x.size(0), x.size(1), l, -1) with l = H  ->  (B, C, H, W)
    return out2d.reshape(B, C, H, W)


# --------------------------------------------------------------------------- #
# Reference / init
# --------------------------------------------------------------------------- #
def init_encoder_params(key, input_size, hidden_size, num_layer):
    """PyTorch-style (uniform +-1/sqrt(fan_in)) Linear init."""
    dims = [input_size, hidden_size]
    for _ in range(num_layer - 2):
        dims.append(hidden_size)
    dims.append(input_size)

    weights, biases = [], []
    for i in range(len(dims) - 1):
        fan_in, fan_out = dims[i], dims[i + 1]
        key, kw, kb = jax.random.split(key, 3)
        bound = 1.0 / jnp.sqrt(jnp.float32(fan_in))
        w = jax.random.uniform(kw, (fan_in, fan_out), jnp.float32, -bound, bound)
        b = jax.random.uniform(kb, (fan_out,), jnp.float32, -bound, bound)
        weights.append(w)
        biases.append(b)
    return weights, biases


def encoder_reference(x_nchw, weights, biases, input_size):
    """Pure-JAX reference of the PyTorch forward (non-mnist branch)."""
    B, C, H, W = x_nchw.shape
    h = x_nchw.astype(jnp.float32).reshape(B, C, input_size)
    n = len(weights)
    for i, (w, b) in enumerate(zip(weights, biases)):
        h = h @ w + b
        if i < n - 1:
            h = jnp.maximum(h, 0.0)
    return h.reshape(B, C, H, W)


# --------------------------------------------------------------------------- #
if __name__ == "__main__":
    key = jax.random.PRNGKey(0)
    ok = True

    # --- Config A: (2, 4, 16, 16) -> input_size=256, hidden=32, 3 Linears ----
    B, C, H, W = 2, 4, 16, 16
    input_size = H * W          # 256
    hidden_size = 32
    key, kx, kp = jax.random.split(key, 3)
    x = jax.random.normal(kx, (B, C, H, W), jnp.float32)
    weights, biases = init_encoder_params(kp, input_size, hidden_size,
                                          num_layer=3)
    ref = encoder_reference(x, weights, biases, input_size)

    # f32 path: exact within tight tolerance.
    params_f32 = prepare_encoder_params(weights, biases, input_size=input_size,
                                        compute_dtype=jnp.float32)
    out = jax.block_until_ready(
        encoder_forward(x, params_f32, input_size=input_size,
                        compute_dtype=jnp.float32))
    assert out.shape == (B, C, H, W)
    ok &= bool(jnp.allclose(out, ref, atol=1e-5, rtol=1e-5))

    # bf16-operand path (f32 accumulation): looser tolerance.
    params_bf16 = prepare_encoder_params(weights, biases, input_size=input_size,
                                         compute_dtype=jnp.bfloat16)
    out_bf16 = jax.block_until_ready(
        encoder_forward(x, params_bf16, input_size=input_size,
                        compute_dtype=jnp.bfloat16))
    ok &= bool(jnp.allclose(out_bf16, ref, atol=5e-2, rtol=5e-2))

    # --- Config B: input_size=64 (not a multiple of 128) -> full-dim blocks --
    B2, C2, H2, W2 = 2, 4, 8, 8
    input_size2 = H2 * W2       # 64
    key, kx2, kp2 = jax.random.split(key, 3)
    x2 = jax.random.normal(kx2, (B2, C2, H2, W2), jnp.float32)
    w2, b2 = init_encoder_params(kp2, input_size2, 16, num_layer=2)
    ref2 = encoder_reference(x2, w2, b2, input_size2)
    params2 = prepare_encoder_params(w2, b2, input_size=input_size2,
                                     compute_dtype=jnp.float32)
    out2 = jax.block_until_ready(
        encoder_forward(x2, params2, input_size=input_size2,
                        compute_dtype=jnp.float32))
    assert out2.shape == (B2, C2, H2, W2)
    ok &= bool(jnp.allclose(out2, ref2, atol=1e-5, rtol=1e-5))

    assert ok, "mismatch vs reference"
    print("KERNEL_OK")
</pallas_src>

<mosaic_0001>
module attributes {stable_mosaic.version = 11 : i64} {
  func.func @_encoder_kernel(%arg0: i32, %arg1: memref<8x256xf32, #tpu.memory_space<vmem>>, %arg2: memref<256x128xf32, #tpu.memory_space<vmem>>, %arg3: memref<1x128xf32, #tpu.memory_space<vmem>>, %arg4: memref<128x128xf32, #tpu.memory_space<vmem>>, %arg5: memref<1x128xf32, #tpu.memory_space<vmem>>, %arg6: memref<128x256xf32, #tpu.memory_space<vmem>>, %arg7: memref<1x256xf32, #tpu.memory_space<vmem>>, %arg8: memref<8x256xf32, #tpu.memory_space<vmem>>) attributes {dimension_semantics = [#tpu.dimension_semantics<parallel>], iteration_bounds = array<i64: 1>, scalar_prefetch = 0 : i64, scratch_operands = 0 : i64, tpu.core_type = #tpu.core_type<tc>, window_params = [{transform_indices = @transform_0, window_bounds = array<i64: 8, 256>}, {pipeline_mode = #tpu.pipeline_mode<synchronous>, transform_indices = @transform_1, window_bounds = array<i64: 256, 128>}, {pipeline_mode = #tpu.pipeline_mode<synchronous>, transform_indices = @transform_2, window_bounds = array<i64: 1, 128>}, {pipeline_mode = #tpu.pipeline_mode<synchronous>, transform_indices = @transform_3, window_bounds = array<i64: 128, 128>}, {pipeline_mode = #tpu.pipeline_mode<synchronous>, transform_indices = @transform_4, window_bounds = array<i64: 1, 128>}, {pipeline_mode = #tpu.pipeline_mode<synchronous>, transform_indices = @transform_5, window_bounds = array<i64: 128, 256>}, {pipeline_mode = #tpu.pipeline_mode<synchronous>, transform_indices = @transform_6, window_bounds = array<i64: 1, 256>}, {transform_indices = @transform_7, window_bounds = array<i64: 8, 256>}]} {
    %c0 = arith.constant 0 : index
    %c0_0 = arith.constant 0 : index
    %0 = vector.load %arg1[%c0, %c0_0] : memref<8x256xf32, #tpu.memory_space<vmem>>, vector<8x256xf32>
    %c0_1 = arith.constant 0 : index
    %c0_2 = arith.constant 0 : index
    %1 = vector.load %arg2[%c0_1, %c0_2] : memref<256x128xf32, #tpu.memory_space<vmem>>, vector<256x128xf32>
    %cst = arith.constant dense<0.000000e+00> : vector<8x128xf32>
    %2 = tpu.matmul %0, %1, %cst {dimension_numbers = #tpu.dot_dimension_numbers<[1], [0], [0], [1], [0, 0, 1, 1], [], []>} : vector<8x256xf32>, vector<256x128xf32>, vector<8x128xf32> -> vector<8x128xf32>
    %c0_3 = arith.constant 0 : index
    %c0_4 = arith.constant 0 : index
    %3 = vector.load %arg3[%c0_3, %c0_4] : memref<1x128xf32, #tpu.memory_space<vmem>>, vector<1x128xf32>
    %4 = vector.broadcast %3 : vector<1x128xf32> to vector<8x128xf32>
    %5 = arith.addf %2, %4 : vector<8x128xf32>
    %cst_5 = arith.constant 0.000000e+00 : f32
    %6 = vector.broadcast %cst_5 : f32 to vector<8x128xf32>
    %7 = arith.maximumf %5, %6 : vector<8x128xf32>
    %c0_6 = arith.constant 0 : index
    %c0_7 = arith.constant 0 : index
    %8 = vector.load %arg4[%c0_6, %c0_7] : memref<128x128xf32, #tpu.memory_space<vmem>>, vector<128x128xf32>
    %cst_8 = arith.constant dense<0.000000e+00> : vector<8x128xf32>
    %9 = tpu.matmul %7, %8, %cst_8 {dimension_numbers = #tpu.dot_dimension_numbers<[1], [0], [0], [1], [0, 0, 1, 1], [], []>} : vector<8x128xf32>, vector<128x128xf32>, vector<8x128xf32> -> vector<8x128xf32>
    %c0_9 = arith.constant 0 : index
    %c0_10 = arith.constant 0 : index
    %10 = vector.load %arg5[%c0_9, %c0_10] : memref<1x128xf32, #tpu.memory_space<vmem>>, vector<1x128xf32>
    %11 = vector.broadcast %10 : vector<1x128xf32> to vector<8x128xf32>
    %12 = arith.addf %9, %11 : vector<8x128xf32>
    %cst_11 = arith.constant 0.000000e+00 : f32
    %13 = vector.broadcast %cst_11 : f32 to vector<8x128xf32>
    %14 = arith.maximumf %12, %13 : vector<8x128xf32>
    %c0_12 = arith.constant 0 : index
    %c0_13 = arith.constant 0 : index
    %15 = vector.load %arg6[%c0_12, %c0_13] : memref<128x256xf32, #tpu.memory_space<vmem>>, vector<128x256xf32>
    %cst_14 = arith.constant dense<0.000000e+00> : vector<8x256xf32>
    %16 = tpu.matmul %14, %15, %cst_14 {dimension_numbers = #tpu.dot_dimension_numbers<[1], [0], [0], [1], [0, 0, 1, 1], [], []>} : vector<8x128xf32>, vector<128x256xf32>, vector<8x256xf32> -> vector<8x256xf32>
    %c0_15 = arith.constant 0 : index
    %c0_16 = arith.constant 0 : index
    %17 = vector.load %arg7[%c0_15, %c0_16] : memref<1x256xf32, #tpu.memory_space<vmem>>, vector<1x256xf32>
    %18 = vector.broadcast %17 : vector<1x256xf32> to vector<8x256xf32>
    %19 = arith.addf %16, %18 : vector<8x256xf32>
    %c0_17 = arith.constant 0 : index
    %c0_18 = arith.constant 0 : index
    %20 = vector.load %arg8[%c0_17, %c0_18] : memref<8x256xf32, #tpu.memory_space<vmem>>, vector<8x256xf32>
    tpu.vector_store %arg8[%c0_17, %c0_18], %19 {strides = array<i32>} : memref<8x256xf32, #tpu.memory_space<vmem>>, vector<8x256xf32>,
    return
  }
  func.func @transform_0(%arg0: i32) -> (i32, i32) {
    %c0_i32 = arith.constant 0 : i32
    %c0_i32_0 = arith.constant 0 : i32
    return %arg0, %c0_i32 : i32, i32
  }
  func.func @transform_1(%arg0: i32) -> (i32, i32) {
    %c0_i32 = arith.constant 0 : i32
    %c0_i32_0 = arith.constant 0 : i32
    %c0_i32_1 = arith.constant 0 : i32
    return %c0_i32, %c0_i32_0 : i32, i32
  }
  func.func @transform_2(%arg0: i32) -> (i32, i32) {
    %c0_i32 = arith.constant 0 : i32
    %c0_i32_0 = arith.constant 0 : i32
    %c0_i32_1 = arith.constant 0 : i32
    return %c0_i32, %c0_i32_0 : i32, i32
  }
  func.func @transform_3(%arg0: i32) -> (i32, i32) {
    %c0_i32 = arith.constant 0 : i32
    %c0_i32_0 = arith.constant 0 : i32
    %c0_i32_1 = arith.constant 0 : i32
    return %c0_i32, %c0_i32_0 : i32, i32
  }
  func.func @transform_4(%arg0: i32) -> (i32, i32) {
    %c0_i32 = arith.constant 0 : i32
    %c0_i32_0 = arith.constant 0 : i32
    %c0_i32_1 = arith.constant 0 : i32
    return %c0_i32, %c0_i32_0 : i32, i32
  }
  func.func @transform_5(%arg0: i32) -> (i32, i32) {
    %c0_i32 = arith.constant 0 : i32
    %c0_i32_0 = arith.constant 0 : i32
    %c0_i32_1 = arith.constant 0 : i32
    return %c0_i32, %c0_i32_0 : i32, i32
  }
  func.func @transform_6(%arg0: i32) -> (i32, i32) {
    %c0_i32 = arith.constant 0 : i32
    %c0_i32_0 = arith.constant 0 : i32
    %c0_i32_1 = arith.constant 0 : i32
    return %c0_i32, %c0_i32_0 : i32, i32
  }
  func.func @transform_7(%arg0: i32) -> (i32, i32) {
    %c0_i32 = arith.constant 0 : i32
    %c0_i32_0 = arith.constant 0 : i32
    return %arg0, %c0_i32 : i32, i32
  }
}

module attributes {stable_mosaic.version = 11 : i64} {
  func.func @_encoder_kernel(%arg0: i32, %arg1: memref<8x256xf32, #tpu.memory_space<vmem>>, %arg2: memref<256x128xf32, #tpu.memory_space<vmem>>, %arg3: memref<1x128xf32, #tpu.memory_space<vmem>>, %arg4: memref<128x128xf32, #tpu.memory_space<vmem>>, %arg5: memref<1x128xf32, #tpu.memory_space<vmem>>, %arg6: memref<128x256xf32, #tpu.memory_space<vmem>>, %arg7: memref<1x256xf32, #tpu.memory_space<vmem>>, %arg8: memref<8x256xf32, #tpu.memory_space<vmem>>) attributes {dimension_semantics = [#tpu.dimension_semantics<parallel>], iteration_bounds = array<i64: 1>, scalar_prefetch = 0 : i64, scratch_operands = 0 : i64, tpu.core_type = #tpu.core_type<tc>, window_params = [{transform_indices = @transform_0, window_bounds = array<i64: 8, 256>}, {pipeline_mode = #tpu.pipeline_mode<synchronous>, transform_indices = @transform_1, window_bounds = array<i64: 256, 128>}, {pipeline_mode = #tpu.pipeline_mode<synchronous>, transform_indices = @transform_2, window_bounds = array<i64: 1, 128>}, {pipeline_mode = #tpu.pipeline_mode<synchronous>, transform_indices = @transform_3, window_bounds = array<i64: 128, 128>}, {pipeline_mode = #tpu.pipeline_mode<synchronous>, transform_indices = @transform_4, window_bounds = array<i64: 1, 128>}, {pipeline_mode = #tpu.pipeline_mode<synchronous>, transform_indices = @transform_5, window_bounds = array<i64: 128, 256>}, {pipeline_mode = #tpu.pipeline_mode<synchronous>, transform_indices = @transform_6, window_bounds = array<i64: 1, 256>}, {transform_indices = @transform_7, window_bounds = array<i64: 8, 256>}]} {
    %c0 = arith.constant 0 : index
    %c0_0 = arith.constant 0 : index
    %0 = vector.load %arg1[%c0, %c0_0] : memref<8x256xf32, #tpu.memory_space<vmem>>, vector<8x256xf32>
    %c0_1 = arith.constant 0 : index
    %c0_2 = arith.constant 0 : index
    %1 = vector.load %arg2[%c0_1, %c0_2] : memref<256x128xf32, #tpu.memory_space<vmem>>, vector<256x128xf32>
    %cst = arith.constant dense<0.000000e+00> : vector<8x128xf32>
    %2 = tpu.matmul %0, %1, %cst {dimension_numbers = #tpu.dot_dimension_numbers<[1], [0], [0], [1], [0, 0, 1, 1], [], []>} : vector<8x256xf32>, vector<256x128xf32>, vector<8x128xf32> -> vector<8x128xf32>
    %c0_3 = arith.constant 0 : index
    %c0_4 = arith.constant 0 : index
    %3 = vector.load %arg3[%c0_3, %c0_4] : memref<1x128xf32, #tpu.memory_space<vmem>>, vector<1x128xf32>
    %4 = vector.broadcast %3 : vector<1x128xf32> to vector<8x128xf32>
    %5 = arith.addf %2, %4 : vector<8x128xf32>
    %cst_5 = arith.constant 0.000000e+00 : f32
    %6 = vector.broadcast %cst_5 : f32 to vector<8x128xf32>
    %7 = arith.maximumf %5, %6 : vector<8x128xf32>
    %c0_6 = arith.constant 0 : index
    %c0_7 = arith.constant 0 : index
    %8 = vector.load %arg4[%c0_6, %c0_7] : memref<128x128xf32, #tpu.memory_space<vmem>>, vector<128x128xf32>
    %cst_8 = arith.constant dense<0.000000e+00> : vector<8x128xf32>
    %9 = tpu.matmul %7, %8, %cst_8 {dimension_numbers = #tpu.dot_dimension_numbers<[1], [0], [0], [1], [0, 0, 1, 1], [], []>} : vector<8x128xf32>, vector<128x128xf32>, vector<8x128xf32> -> vector<8x128xf32>
    %c0_9 = arith.constant 0 : index
    %c0_10 = arith.constant 0 : index
    %10 = vector.load %arg5[%c0_9, %c0_10] : memref<1x128xf32, #tpu.memory_space<vmem>>, vector<1x128xf32>
    %11 = vector.broadcast %10 : vector<1x128xf32> to vector<8x128xf32>
    %12 = arith.addf %9, %11 : vector<8x128xf32>
    %cst_11 = arith.constant 0.000000e+00 : f32
    %13 = vector.broadcast %cst_11 : f32 to vector<8x128xf32>
    %14 = arith.maximumf %12, %13 : vector<8x128xf32>
    %c0_12 = arith.constant 0 : index
    %c0_13 = arith.constant 0 : index
    %15 = vector.load %arg6[%c0_12, %c0_13] : memref<128x256xf32, #tpu.memory_space<vmem>>, vector<128x256xf32>
    %cst_14 = arith.constant dense<0.000000e+00> : vector<8x256xf32>
    %16 = tpu.matmul %14, %15, %cst_14 {dimension_numbers = #tpu.dot_dimension_numbers<[1], [0], [0], [1], [0, 0, 1, 1], [], []>} : vector<8x128xf32>, vector<128x256xf32>, vector<8x256xf32> -> vector<8x256xf32>
    %c0_15 = arith.constant 0 : index
    %c0_16 = arith.constant 0 : index
    %17 = vector.load %arg7[%c0_15, %c0_16] : memref<1x256xf32, #tpu.memory_space<vmem>>, vector<1x256xf32>
    %18 = vector.broadcast %17 : vector<1x256xf32> to vector<8x256xf32>
    %19 = arith.addf %16, %18 : vector<8x256xf32>
    %c0_17 = arith.constant 0 : index
    %c0_18 = arith.constant 0 : index
    %20 = vector.load %arg8[%c0_17, %c0_18] : memref<8x256xf32, #tpu.memory_space<vmem>>, vector<8x256xf32>
    tpu.vector_store %arg8[%c0_17, %c0_18], %19 {strides = array<i32>} : memref<8x256xf32, #tpu.memory_space<vmem>>, vector<8x256xf32>,
    return
  }
  func.func @transform_0(%arg0: i32) -> (i32, i32) {
    %c0_i32 = arith.constant 0 : i32
    %c0_i32_0 = arith.constant 0 : i32
    return %arg0, %c0_i32 : i32, i32
  }
  func.func @transform_1(%arg0: i32) -> (i32, i32) {
    %c0_i32 = arith.constant 0 : i32
    %c0_i32_0 = arith.constant 0 : i32
    %c0_i32_1 = arith.constant 0 : i32
    return %c0_i32, %c0_i32_0 : i32, i32
  }
  func.func @transform_2(%arg0: i32) -> (i32, i32) {
    %c0_i32 = arith.constant 0 : i32
    %c0_i32_0 = arith.constant 0 : i32
    %c0_i32_1 = arith.constant 0 : i32
    return %c0_i32, %c0_i32_0 : i32, i32
  }
  func.func @transform_3(%arg0: i32) -> (i32, i32) {
    %c0_i32 = arith.constant 0 : i32
    %c0_i32_0 = arith.constant 0 : i32
    %c0_i32_1 = arith.constant 0 : i32
    return %c0_i32, %c0_i32_0 : i32, i32
  }
  func.func @transform_4(%arg0: i32) -> (i32, i32) {
    %c0_i32 = arith.constant 0 : i32
    %c0_i32_0 = arith.constant 0 : i32
    %c0_i32_1 = arith.constant 0 : i32
    return %c0_i32, %c0_i32_0 : i32, i32
  }
  func.func @transform_5(%arg0: i32) -> (i32, i32) {
    %c0_i32 = arith.constant 0 : i32
    %c0_i32_0 = arith.constant 0 : i32
    %c0_i32_1 = arith.constant 0 : i32
    return %c0_i32, %c0_i32_0 : i32, i32
  }
  func.func @transform_6(%arg0: i32) -> (i32, i32) {
    %c0_i32 = arith.constant 0 : i32
    %c0_i32_0 = arith.constant 0 : i32
    %c0_i32_1 = arith.constant 0 : i32
    return %c0_i32, %c0_i32_0 : i32, i32
  }
  func.func @transform_7(%arg0: i32) -> (i32, i32) {
    %c0_i32 = arith.constant 0 : i32
    %c0_i32_0 = arith.constant 0 : i32
    return %arg0, %c0_i32 : i32, i32
  }
}

</mosaic_0001>

<llo_original>
// kernel: tpu_custom_call.1
$region0: #{tpu_custom_call.1}
  #allocation0 [shape = 'u32[]', space=smem, size = 0x4, offset = 0x4, fixed_abs, tag = 'smem constant byte address 0x4 - core index']
  #allocation1 [shape = 'u32[144,128]{1,0:T(1,128)}', space=vmem, size = 0x12000, scoped, tag = 'internal scratch']
  %s0 = inlined_call_operand.hbm [shape: f32[8,256], index: 0, kind: input, shape index: {}]
  %s1 = inlined_call_operand.hbm [shape: f32[256,128], index: 1, kind: input, shape index: {}]
  %s2 = inlined_call_operand.vmem [shape: f32[1,128], index: 2, kind: input, shape index: {}]
  %s3 = inlined_call_operand.hbm [shape: f32[128,128], index: 3, kind: input, shape index: {}]
  %s4 = inlined_call_operand.vmem [shape: f32[1,128], index: 4, kind: input, shape index: {}]
  %s5 = inlined_call_operand.hbm [shape: f32[128,256], index: 5, kind: input, shape index: {}]
  %s6 = inlined_call_operand.vmem [shape: f32[1,256], index: 6, kind: input, shape index: {}]
  %s7 = inlined_call_operand.hbm [shape: f32[8,256], index: 7, kind: output, shape index: {}]
  %s8 = sld [smem:[#allocation0]]
  $region54: #{tpu_custom_call.1} parent=0
    _
  %s10 = ssub.s32 1, %s8
  %s11 = scalar_select 0, %s10, %s8
  $region1: #{tpu_custom_call.1} parent=0
    #allocation2 [shape = 'u8[8192]{0}', space=vmem, size = 0x2000, scoped, tag = 'input window, operand 0, single buffered']
    #allocation3 [shape = 's32[1]{0}', space=sflag, size = 0x4, scoped, tag = 'scoped memory for tpu_custom_call.1']
    #allocation4 [shape = 's32[1]{0}', space=sflag, size = 0x4, scoped, tag = 'scoped memory for tpu_custom_call.1']
    #allocation5 [shape = 'u8[131072]{0}', space=vmem, size = 0x20000, scoped, tag = 'input window, operand 1, single buffered']
    #allocation6 [shape = 's32[1]{0}', space=sflag, size = 0x4, scoped, tag = 'scoped memory for tpu_custom_call.1']
    #allocation7 [shape = 'u8[65536]{0}', space=vmem, size = 0x10000, scoped, tag = 'input window, operand 3, single buffered']
    #allocation8 [shape = 'u8[131072]{0}', space=vmem, size = 0x20000, scoped, tag = 'input window, operand 5, single buffered']
    #allocation9 [shape = 's32[1]{0}', space=sflag, size = 0x4, scoped, tag = 'scoped memory for tpu_custom_call.1']
    #allocation10 [shape = 'u8[8192]{0}', space=vmem, size = 0x2000, scoped, tag = 'output window, operand 0, single buffered']
    %12 = vsyncpa [#allocation3], 0
    %13 = vsyncpa [#allocation6], 0
    %14 = vsyncpa [#allocation9], 0
    %15 = vsyncpa [#allocation4], 0
    // Predicated region
    $region2: #{tpu_custom_call.1} parent=1 // pred_check
      _
    $region3: #{tpu_custom_call.1} parent=1 // pred_check_branch
      %17 = sbr.rel (0) target = $region5
    $region4: #{tpu_custom_call.1} parent=1 // pred_region
      %s19 = ssub.s32 256, 256
      %20 = vsyncadd [#allocation3], %s19
      %s22 = sshll.u32 [#allocation2], 4
      %s23 = int_to_ptr.vmem [resolvable:$true] %s22
      %25 = dma.hbm_to_vmem [thread:$0]  %s0, 256, %s23, [#allocation3]
    $region5: #{tpu_custom_call.1} parent=1 // pred_fallthru
      _
    // Predicated region
    $region6: #{tpu_custom_call.1} parent=1 // pred_check
      _
    $region7: #{tpu_custom_call.1} parent=1 // pred_check_branch
      %27 = sbr.rel (0) target = $region9
    $region8: #{tpu_custom_call.1} parent=1 // pred_region
      %s29 = ssub.s32 4096, 4096
      %30 = vsyncadd [#allocation6], %s29
      %s31 = sshll.u32 [#allocation5], 4
      %s32 = int_to_ptr.vmem [resolvable:$true] %s31
      %37 = dma.hbm_to_vmem [thread:$0]  %s1, 4096, %s32, [#allocation6], 128, 128, 8
    $region9: #{tpu_custom_call.1} parent=1 // pred_fallthru
      _
    // Predicated region
    $region10: #{tpu_custom_call.1} parent=1 // pred_check
      _
    $region11: #{tpu_custom_call.1} parent=1 // pred_check_branch
      %39 = sbr.rel (0) target = $region13
    $region12: #{tpu_custom_call.1} parent=1 // pred_region
      _
    $region13: #{tpu_custom_call.1} parent=1 // pred_fallthru
      _
    // Predicated region
    $region14: #{tpu_custom_call.1} parent=1 // pred_check
      _
    $region15: #{tpu_custom_call.1} parent=1 // pred_check_branch
      %41 = sbr.rel (0) target = $region17
    $region16: #{tpu_custom_call.1} parent=1 // pred_region
      %s43 = ssub.s32 2048, 2048
      %44 = vsyncadd [#allocation6], %s43
      %s45 = sshll.u32 [#allocation7], 4
      %s46 = int_to_ptr.vmem [resolvable:$true] %s45
      %51 = dma.hbm_to_vmem [thread:$0]  %s3, 2048, %s46, [#allocation6], 128, 128, 8
    $region17: #{tpu_custom_call.1} parent=1 // pred_fallthru
      _
    // Predicated region
    $region18: #{tpu_custom_call.1} parent=1 // pred_check
      _
    $region19: #{tpu_custom_call.1} parent=1 // pred_check_branch
      %53 = sbr.rel (0) target = $region21
    $region20: #{tpu_custom_call.1} parent=1 // pred_region
      _
    $region21: #{tpu_custom_call.1} parent=1 // pred_fallthru
      _
    // Predicated region
    $region22: #{tpu_custom_call.1} parent=1 // pred_check
      _
    $region23: #{tpu_custom_call.1} parent=1 // pred_check_branch
      %55 = sbr.rel (0) target = $region25
    $region24: #{tpu_custom_call.1} parent=1 // pred_region
      %s57 = ssub.s32 4096, 4096
      %58 = vsyncadd [#allocation9], %s57
      %s59 = sshll.u32 [#allocation8], 4
      %s60 = int_to_ptr.vmem [resolvable:$true] %s59
      %65 = dma.hbm_to_vmem [thread:$0]  %s5, 4096, %s60, [#allocation9], 256, 256, 16
    $region25: #{tpu_custom_call.1} parent=1 // pred_fallthru
      _
    // Predicated region
    $region26: #{tpu_custom_call.1} parent=1 // pred_check
      _
    $region27: #{tpu_custom_call.1} parent=1 // pred_check_branch
      %67 = sbr.rel (0) target = $region29
    $region28: #{tpu_custom_call.1} parent=1 // pred_region
      _
    $region29: #{tpu_custom_call.1} parent=1 // pred_fallthru
      _
    // Predicated region
    $region30: #{tpu_custom_call.1} parent=1 // pred_check
      _
    $region31: #{tpu_custom_call.1} parent=1 // pred_check_branch
      %69 = sbr.rel (0) target = $region33
    $region32: #{tpu_custom_call.1} parent=1 // pred_region
      %70 = dma.done [#allocation3], 256
    $region33: #{tpu_custom_call.1} parent=1 // pred_fallthru
      _
    // Predicated region
    $region34: #{tpu_custom_call.1} parent=1 // pred_check
      _
    $region35: #{tpu_custom_call.1} parent=1 // pred_check_branch
      %72 = sbr.rel (0) target = $region37
    $region36: #{tpu_custom_call.1} parent=1 // pred_region
      %73 = dma.done [#allocation6], 4096
    $region37: #{tpu_custom_call.1} parent=1 // pred_fallthru
      _
    // Predicated region
    $region38: #{tpu_custom_call.1} parent=1 // pred_check
      _
    $region39: #{tpu_custom_call.1} parent=1 // pred_check_branch
      %75 = sbr.rel (0) target = $region41
    $region40: #{tpu_custom_call.1} parent=1 // pred_region
      %76 = dma.done [#allocation6], 2048
    $region41: #{tpu_custom_call.1} parent=1 // pred_fallthru
      _
    // Predicated region
    $region42: #{tpu_custom_call.1} parent=1 // pred_check
      _
    $region43: #{tpu_custom_call.1} parent=1 // pred_check_branch
      %78 = sbr.rel (0) target = $region45
    $region44: #{tpu_custom_call.1} parent=1 // pred_region
      %79 = dma.done [#allocation9], 4096
    $region45: #{tpu_custom_call.1} parent=1 // pred_fallthru
      _
    %v80 = vld [vmem:[#allocation2] sm:$0xff]
    %v81 = vld [vmem:[#allocation2 + $0x8] sm:$0xff]
    %v82 = vld [vmem:[#allocation5] sm:$0xff]
    %v83 = vld [vmem:[#allocation5 + $0x8] sm:$0xff]
    %v84 = vld [vmem:[#allocation5 + $0x10] sm:$0xff]
    %v85 = vld [vmem:[#allocation5 + $0x18] sm:$0xff]
    %v86 = vld [vmem:[#allocation5 + $0x20] sm:$0xff]
    %v87 = vld [vmem:[#allocation5 + $0x28] sm:$0xff]
    %v88 = vld [vmem:[#allocation5 + $0x30] sm:$0xff]
    %v89 = vld [vmem:[#allocation5 + $0x38] sm:$0xff]
    %v90 = vld [vmem:[#allocation5 + $0x40] sm:$0xff]
    %v91 = vld [vmem:[#allocation5 + $0x48] sm:$0xff]
    %v92 = vld [vmem:[#allocation5 + $0x50] sm:$0xff]
    %v93 = vld [vmem:[#allocation5 + $0x58] sm:$0xff]
    %v94 = vld [vmem:[#allocation5 + $0x60] sm:$0xff]
    %v95 = vld [vmem:[#allocation5 + $0x68] sm:$0xff]
    %v96 = vld [vmem:[#allocation5 + $0x70] sm:$0xff]
    %v97 = vld [vmem:[#allocation5 + $0x78] sm:$0xff]
    %v98 = vld [vmem:[#allocation5 + $0x80] sm:$0xff]
    %v99 = vld [vmem:[#allocation5 + $0x88] sm:$0xff]
    %v100 = vld [vmem:[#allocation5 + $0x90] sm:$0xff]
    %v101 = vld [vmem:[#allocation5 + $0x98] sm:$0xff]
    %v102 = vld [vmem:[#allocation5 + $0xa0] sm:$0xff]
    %v103 = vld [vmem:[#allocation5 + $0xa8] sm:$0xff]
    %v104 = vld [vmem:[#allocation5 + $0xb0] sm:$0xff]
    %v105 = vld [vmem:[#allocation5 + $0xb8] sm:$0xff]
    %v106 = vld [vmem:[#allocation5 + $0xc0] sm:$0xff]
    %v107 = vld [vmem:[#allocation5 + $0xc8] sm:$0xff]
    %v108 = vld [vmem:[#allocation5 + $0xd0] sm:$0xff]
    %v109 = vld [vmem:[#allocation5 + $0xd8] sm:$0xff]
    %v110 = vld [vmem:[#allocation5 + $0xe0] sm:$0xff]
    %v111 = vld [vmem:[#allocation5 + $0xe8] sm:$0xff]
    %v112 = vld [vmem:[#allocation5 + $0xf0] sm:$0xff]
    %v113 = vld [vmem:[#allocation5 + $0xf8] sm:$0xff]
    %v114 = vld [vmem:[%s2] sm:$0x1]
    %v116 = vlaneseq
    %v117 = vshrl.u32 %v116, 7
    %v118 = vsub.s32 0, %v117
    %v119 = vrot.slane %v114, %v118
    %121 = vmatprep.subr.mxu0 0.0
    %122 = vmatpush1.msra.mxu0 %v82
    %123 = vmatprep.subr.mxu0 0.0
    %124 = vmatpush1.msra.mxu0 %v83
    %125 = vmatprep.subr.mxu0 0.0
    %126 = vmatpush1.msra.mxu0 %v84
    %127 = vmatprep.subr.mxu0 0.0
    %128 = vmatpush1.msra.mxu0 %v85
    %129 = vmatprep.subr.mxu0 0.0
    %130 = vmatpush1.msra.mxu0 %v86
    %131 = vmatprep.subr.mxu0 0.0
    %132 = vmatpush1.msra.mxu0 %v87
    %133 = vmatprep.subr.mxu0 0.0
    %134 = vmatpush1.msra.mxu0 %v88
    %135 = vmatprep.subr.mxu0 0.0
    %136 = vmatpush1.msra.mxu0 %v89
    %137 = vmatprep.subr.mxu0 0.0
    %138 = vmatpush1.msra.mxu0 %v90
    %139 = vmatprep.subr.mxu0 0.0
    %140 = vmatpush1.msra.mxu0 %v91
    %141 = vmatprep.subr.mxu0 0.0
    %142 = vmatpush1.msra.mxu0 %v92
    %143 = vmatprep.subr.mxu0 0.0
    %144 = vmatpush1.msra.mxu0 %v93
    %145 = vmatprep.subr.mxu0 0.0
    %146 = vmatpush1.msra.mxu0 %v94
    %147 = vmatprep.subr.mxu0 0.0
    %148 = vmatpush1.msra.mxu0 %v95
    %149 = vmatprep.subr.mxu0 0.0
    %150 = vmatpush1.msra.mxu0 %v96
    %151 = vmatprep.subr.mxu0 0.0
    %152 = vmatpush1.msra.mxu0 %v97
    %153 = vmatprep.subr.mxu0 0.0
    %154 = vmatpush1.msra.mxu0 %v98
    %155 = vmatprep.subr.mxu0 0.0
    %156 = vmatpush1.msra.mxu0 %v99
    %157 = vmatprep.subr.mxu0 0.0
    %158 = vmatpush1.msra.mxu0 %v100
    %159 = vmatprep.subr.mxu0 0.0
    %160 = vmatpush1.msra.mxu0 %v101
    %161 = vmatprep.subr.mxu0 0.0
    %162 = vmatpush1.msra.mxu0 %v102
    %163 = vmatprep.subr.mxu0 0.0
    %164 = vmatpush1.msra.mxu0 %v103
    %165 = vmatprep.subr.mxu0 0.0
    %166 = vmatpush1.msra.mxu0 %v104
    %167 = vmatprep.subr.mxu0 0.0
    %168 = vmatpush1.msra.mxu0 %v105
    %169 = vmatprep.subr.mxu0 0.0
    %170 = vmatpush1.msra.mxu0 %v106
    %171 = vmatprep.subr.mxu0 0.0
    %172 = vmatpush1.msra.mxu0 %v107
    %173 = vmatprep.subr.mxu0 0.0
    %174 = vmatpush1.msra.mxu0 %v108
    %175 = vmatprep.subr.mxu0 0.0
    %176 = vmatpush1.msra.mxu0 %v109
    %177 = vmatprep.subr.mxu0 0.0
    %178 = vmatpush1.msra.mxu0 %v110
    %179 = vmatprep.subr.mxu0 0.0
    %180 = vmatpush1.msra.mxu0 %v111
    %181 = vmatprep.subr.mxu0 0.0
    %182 = vmatpush1.msra.mxu0 %v112
    %183 = vmatprep.subr.mxu0 0.0
    %184 = vmatpush1.msra.mxu0 %v113
    %185 = vmatprep.mubr.f32.mxu0 %v81
    %186 = vmatmul.mubr.f32.gmra.mrb[0].mxu0 %v80
    %v187 = vpop.f32.mrb[0].mxu0
    %v188 = vadd.f32 %v119, %v187
    %v189 = vpop.f32.mrb[0].mxu0
    %190 = vdwg.mxu0
    %v191 = vmax.f32 %v188, 0.0
    %v192 = vld [vmem:[#allocation7] sm:$0xff]
    %v193 = vld [vmem:[#allocation7 + $0x8] sm:$0xff]
    %v194 = vld [vmem:[#allocation7 + $0x10] sm:$0xff]
    %v195 = vld [vmem:[#allocation7 + $0x18] sm:$0xff]
    %v196 = vld [vmem:[#allocation7 + $0x20] sm:$0xff]
    %v197 = vld [vmem:[#allocation7 + $0x28] sm:$0xff]
    %v198 = vld [vmem:[#allocation7 + $0x30] sm:$0xff]
    %v199 = vld [vmem:[#allocation7 + $0x38] sm:$0xff]
    %v200 = vld [vmem:[#allocation7 + $0x40] sm:$0xff]
    %v201 = vld [vmem:[#allocation7 + $0x48] sm:$0xff]
    %v202 = vld [vmem:[#allocation7 + $0x50] sm:$0xff]
    %v203 = vld [vmem:[#allocation7 + $0x58] sm:$0xff]
    %v204 = vld [vmem:[#allocation7 + $0x60] sm:$0xff]
    %v205 = vld [vmem:[#allocation7 + $0x68] sm:$0xff]
    %v206 = vld [vmem:[#allocation7 + $0x70] sm:$0xff]
    %v207 = vld [vmem:[#allocation7 + $0x78] sm:$0xff]
    %v208 = vld [vmem:[%s4] sm:$0x1]
    %v210 = vlaneseq
    %v211 = vshrl.u32 %v210, 7
    %v212 = vsub.s32 0, %v211
    %v213 = vrot.slane %v208, %v212
    %215 = vmatprep.subr.mxu0 0.0
    %216 = vmatpush1.msra.mxu0 %v192
    %217 = vmatprep.subr.mxu0 0.0
    %218 = vmatpush1.msra.mxu0 %v193
    %219 = vmatprep.subr.mxu0 0.0
    %220 = vmatpush1.msra.mxu0 %v194
    %221 = vmatprep.subr.mxu0 0.0
    %222 = vmatpush1.msra.mxu0 %v195
    %223 = vmatprep.subr.mxu0 0.0
    %224 = vmatpush1.msra.mxu0 %v196
    %225 = vmatprep.subr.mxu0 0.0
    %226 = vmatpush1.msra.mxu0 %v197
    %227 = vmatprep.subr.mxu0 0.0
    %228 = vmatpush1.msra.mxu0 %v198
    %229 = vmatprep.subr.mxu0 0.0
    %230 = vmatpush1.msra.mxu0 %v199
    %231 = vmatprep.subr.mxu0 0.0
    %232 = vmatpush1.msra.mxu0 %v200
    %233 = vmatprep.subr.mxu0 0.0
    %234 = vmatpush1.msra.mxu0 %v201
    %235 = vmatprep.subr.mxu0 0.0
    %236 = vmatpush1.msra.mxu0 %v202
    %237 = vmatprep.subr.mxu0 0.0
    %238 = vmatpush1.msra.mxu0 %v203
    %239 = vmatprep.subr.mxu0 0.0
    %240 = vmatpush1.msra.mxu0 %v204
    %241 = vmatprep.subr.mxu0 0.0
    %242 = vmatpush1.msra.mxu0 %v205
    %243 = vmatprep.subr.mxu0 0.0
    %244 = vmatpush1.msra.mxu0 %v206
    %245 = vmatprep.subr.mxu0 0.0
    %246 = vmatpush1.msra.mxu0 %v207
    %247 = vmatprep.subr.mxu0 0.0
    %248 = vmatpush1.msra.mxu0 0.0
    %249 = vmatprep.subr.mxu0 0.0
    %250 = vmatpush1.msra.mxu0 0.0
    %251 = vmatprep.subr.mxu0 0.0
    %252 = vmatpush1.msra.mxu0 0.0
    %253 = vmatprep.subr.mxu0 0.0
    %254 = vmatpush1.msra.mxu0 0.0
    %255 = vmatprep.subr.mxu0 0.0
    %256 = vmatpush1.msra.mxu0 0.0
    %257 = vmatprep.subr.mxu0 0.0
    %258 = vmatpush1.msra.mxu0 0.0
    %259 = vmatprep.subr.mxu0 0.0
    %260 = vmatpush1.msra.mxu0 0.0
    %261 = vmatprep.subr.mxu0 0.0
    %262 = vmatpush1.msra.mxu0 0.0
    %263 = vmatprep.subr.mxu0 0.0
    %264 = vmatpush1.msra.mxu0 0.0
    %265 = vmatprep.subr.mxu0 0.0
    %266 = vmatpush1.msra.mxu0 0.0
    %267 = vmatprep.subr.mxu0 0.0
    %268 = vmatpush1.msra.mxu0 0.0
    %269 = vmatprep.subr.mxu0 0.0
    %270 = vmatpush1.msra.mxu0 0.0
    %271 = vmatprep.subr.mxu0 0.0
    %272 = vmatpush1.msra.mxu0 0.0
    %273 = vmatprep.subr.mxu0 0.0
    %274 = vmatpush1.msra.mxu0 0.0
    %275 = vmatprep.subr.mxu0 0.0
    %276 = vmatpush1.msra.mxu0 0.0
    %277 = vmatprep.subr.mxu0 0.0
    %278 = vmatpush1.msra.mxu0 0.0
    %279 = vmatprep.mubr.f32.mxu0 0.0
    %280 = vmatmul.mubr.f32.gmra.mrb[0].mxu0 %v191
    %v281 = vpop.f32.mrb[0].mxu0
    %v282 = vadd.f32 %v213, %v281
    %v283 = vpop.f32.mrb[0].mxu0
    %284 = vdwg.mxu0
    %v285 = vmax.f32 %v282, 0.0
    %v286 = vld [vmem:[#allocation8] sm:$0xff]
    %v287 = vld [vmem:[#allocation8 + $0x8] sm:$0xff]
    %v288 = vld [vmem:[#allocation8 + $0x10] sm:$0xff]
    %v289 = vld [vmem:[#allocation8 + $0x18] sm:$0xff]
    %v290 = vld [vmem:[#allocation8 + $0x20] sm:$0xff]
    %v291 = vld [vmem:[#allocation8 + $0x28] sm:$0xff]
    %v292 = vld [vmem:[#allocation8 + $0x30] sm:$0xff]
    %v293 = vld [vmem:[#allocation8 + $0x38] sm:$0xff]
    %v294 = vld [vmem:[#allocation8 + $0x40] sm:$0xff]
    %v295 = vld [vmem:[#allocation8 + $0x48] sm:$0xff]
    %v296 = vld [vmem:[#allocation8 + $0x50] sm:$0xff]
    %v297 = vld [vmem:[#allocation8 + $0x58] sm:$0xff]
    %v298 = vld [vmem:[#allocation8 + $0x60] sm:$0xff]
    %v299 = vld [vmem:[#allocation8 + $0x68] sm:$0xff]
    %v300 = vld [vmem:[#allocation8 + $0x70] sm:$0xff]
    %v301 = vld [vmem:[#allocation8 + $0x78] sm:$0xff]
    %v302 = vld [vmem:[#allocation8 + $0x80] sm:$0xff]
    %v303 = vld [vmem:[#allocation8 + $0x88] sm:$0xff]
    %v304 = vld [vmem:[#allocation8 + $0x90] sm:$0xff]
    %v305 = vld [vmem:[#allocation8 + $0x98] sm:$0xff]
    %v306 = vld [vmem:[#allocation8 + $0xa0] sm:$0xff]
    %v307 = vld [vmem:[#allocation8 + $0xa8] sm:$0xff]
    %v308 = vld [vmem:[#allocation8 + $0xb0] sm:$0xff]
    %v309 = vld [vmem:[#allocation8 + $0xb8] sm:$0xff]
    %v310 = vld [vmem:[#allocation8 + $0xc0] sm:$0xff]
    %v311 = vld [vmem:[#allocation8 + $0xc8] sm:$0xff]
    %v312 = vld [vmem:[#allocation8 + $0xd0] sm:$0xff]
    %v313 = vld [vmem:[#allocation8 + $0xd8] sm:$0xff]
    %v314 = vld [vmem:[#allocation8 + $0xe0] sm:$0xff]
    %v315 = vld [vmem:[#allocation8 + $0xe8] sm:$0xff]
    %v316 = vld [vmem:[#allocation8 + $0xf0] sm:$0xff]
    %v317 = vld [vmem:[#allocation8 + $0xf8] sm:$0xff]
    %v318 = vld [vmem:[%s6] sm:$0x3]
    %v320 = vlaneseq
    %v321 = vshrl.u32 %v320, 7
    %v322 = vsub.s32 0, %v321
    %v323 = vrot.slane %v318, %v322
    %v324 = vlaneseq
    %v325 = vshrl.u32 %v324, 7
    %v326 = vsub.s32 1, %v325
    %v327 = vrot.slane %v318, %v326
    %330 = vmatprep.subr.mxu0 %v287
    %331 = vmatpush1.msra.mxu0 %v286
    %332 = vmatprep.subr.mxu0 %v289
    %333 = vmatpush1.msra.mxu0 %v288
    %334 = vmatprep.subr.mxu0 %v291
    %335 = vmatpush1.msra.mxu0 %v290
    %336 = vmatprep.subr.mxu0 %v293
    %337 = vmatpush1.msra.mxu0 %v292
    %338 = vmatprep.subr.mxu0 %v295
    %339 = vmatpush1.msra.mxu0 %v294
    %340 = vmatprep.subr.mxu0 %v297
    %341 = vmatpush1.msra.mxu0 %v296
    %342 = vmatprep.subr.mxu0 %v299
    %343 = vmatpush1.msra.mxu0 %v298
    %344 = vmatprep.subr.mxu0 %v301
    %345 = vmatpush1.msra.mxu0 %v300
    %346 = vmatprep.subr.mxu0 %v303
    %347 = vmatpush1.msra.mxu0 %v302
    %348 = vmatprep.subr.mxu0 %v305
    %349 = vmatpush1.msra.mxu0 %v304
    %350 = vmatprep.subr.mxu0 %v307
    %351 = vmatpush1.msra.mxu0 %v306
    %352 = vmatprep.subr.mxu0 %v309
    %353 = vmatpush1.msra.mxu0 %v308
    %354 = vmatprep.subr.mxu0 %v311
    %355 = vmatpush1.msra.mxu0 %v310
    %356 = vmatprep.subr.mxu0 %v313
    %357 = vmatpush1.msra.mxu0 %v312
    %358 = vmatprep.subr.mxu0 %v315
    %359 = vmatpush1.msra.mxu0 %v314
    %360 = vmatprep.subr.mxu0 %v317
    %361 = vmatpush1.msra.mxu0 %v316
    %362 = vmatprep.subr.mxu0 0.0
    %363 = vmatpush1.msra.mxu0 0.0
    %364 = vmatprep.subr.mxu0 0.0
    %365 = vmatpush1.msra.mxu0 0.0
    %366 = vmatprep.subr.mxu0 0.0
    %367 = vmatpush1.msra.mxu0 0.0
    %368 = vmatprep.subr.mxu0 0.0
    %369 = vmatpush1.msra.mxu0 0.0
    %370 = vmatprep.subr.mxu0 0.0
    %371 = vmatpush1.msra.mxu0 0.0
    %372 = vmatprep.subr.mxu0 0.0
    %373 = vmatpush1.msra.mxu0 0.0
    %374 = vmatprep.subr.mxu0 0.0
    %375 = vmatpush1.msra.mxu0 0.0
    %376 = vmatprep.subr.mxu0 0.0
    %377 = vmatpush1.msra.mxu0 0.0
    %378 = vmatprep.subr.mxu0 0.0
    %379 = vmatpush1.msra.mxu0 0.0
    %380 = vmatprep.subr.mxu0 0.0
    %381 = vmatpush1.msra.mxu0 0.0
    %382 = vmatprep.subr.mxu0 0.0
    %383 = vmatpush1.msra.mxu0 0.0
    %384 = vmatprep.subr.mxu0 0.0
    %385 = vmatpush1.msra.mxu0 0.0
    %386 = vmatprep.subr.mxu0 0.0
    %387 = vmatpush1.msra.mxu0 0.0
    %388 = vmatprep.subr.mxu0 0.0
    %389 = vmatpush1.msra.mxu0 0.0
    %390 = vmatprep.subr.mxu0 0.0
    %391 = vmatpush1.msra.mxu0 0.0
    %392 = vmatprep.subr.mxu0 0.0
    %393 = vmatpush1.msra.mxu0 0.0
    %394 = vmatprep.mubr.f32.mxu0 0.0
    %395 = vmatmul.mubr.f32.gmra.mrb[0].mxu0 %v285
    %v396 = vpop.f32.mrb[0].mxu0
    %v397 = vadd.f32 %v323, %v396
    %v398 = vpop.f32.mrb[0].mxu0
    %v399 = vadd.f32 %v327, %v398
    %400 = vdwg.mxu0
    %401 = vst [vmem:[#allocation10] sm:$0xff] %v397
    %402 = vst [vmem:[#allocation10 + $0x8] sm:$0xff] %v399
    // Predicated region
    $region46: #{tpu_custom_call.1} parent=1 // pred_check
      _
    $region47: #{tpu_custom_call.1} parent=1 // pred_check_branch
      %404 = sbr.rel (0) target = $region49
    $region48: #{tpu_custom_call.1} parent=1 // pred_region
      %s406 = ssub.s32 256, 256
      %407 = vsyncadd [#allocation4], %s406
      %s409 = sshll.u32 [#allocation10], 4
      %s410 = int_to_ptr.vmem [resolvable:$true] %s409
      %412 = dma.vmem_to_hbm [thread:$0]  %s410, 256, %s7, [#allocation4]
    $region49: #{tpu_custom_call.1} parent=1 // pred_fallthru
      _
    // Predicated region
    $region50: #{tpu_custom_call.1} parent=1 // pred_check
      _
    $region51: #{tpu_custom_call.1} parent=1 // pred_check_branch
      %414 = sbr.rel (0) target = $region53
    $region52: #{tpu_custom_call.1} parent=1 // pred_region
      %415 = dma.done [#allocation4], 256
    $region53: #{tpu_custom_call.1} parent=1 // pred_fallthru
      _
    %416 = vsyncpa [#allocation3], 1
    %417 = vsyncpa [#allocation6], 1
    %418 = vsyncpa [#allocation9], 1
    %419 = vsyncpa [#allocation4], 1

// kernel: tpu_custom_call.1
$region0: #{tpu_custom_call.1}
  #allocation0 [shape = 'u32[]', space=smem, size = 0x4, offset = 0x4, fixed_abs, tag = 'smem constant byte address 0x4 - core index']
  #allocation1 [shape = 'u32[144,128]{1,0:T(1,128)}', space=vmem, size = 0x12000, scoped, tag = 'internal scratch']
  %s0 = inlined_call_operand.hbm [shape: f32[8,256], index: 0, kind: input, shape index: {}]
  %s1 = inlined_call_operand.hbm [shape: f32[256,128], index: 1, kind: input, shape index: {}]
  %s2 = inlined_call_operand.vmem [shape: f32[1,128], index: 2, kind: input, shape index: {}]
  %s3 = inlined_call_operand.hbm [shape: f32[128,128], index: 3, kind: input, shape index: {}]
  %s4 = inlined_call_operand.vmem [shape: f32[1,128], index: 4, kind: input, shape index: {}]
  %s5 = inlined_call_operand.hbm [shape: f32[128,256], index: 5, kind: input, shape index: {}]
  %s6 = inlined_call_operand.vmem [shape: f32[1,256], index: 6, kind: input, shape index: {}]
  %s7 = inlined_call_operand.hbm [shape: f32[8,256], index: 7, kind: output, shape index: {}]
  %s8 = sld [smem:[#allocation0]]
  $region54: #{tpu_custom_call.1} parent=0
    _
  %s10 = ssub.s32 1, %s8
  %s11 = scalar_select 0, %s10, %s8
  $region1: #{tpu_custom_call.1} parent=0
    #allocation2 [shape = 'u8[8192]{0}', space=vmem, size = 0x2000, scoped, tag = 'input window, operand 0, single buffered']
    #allocation3 [shape = 's32[1]{0}', space=sflag, size = 0x4, scoped, tag = 'scoped memory for tpu_custom_call.1']
    #allocation4 [shape = 's32[1]{0}', space=sflag, size = 0x4, scoped, tag = 'scoped memory for tpu_custom_call.1']
    #allocation5 [shape = 'u8[131072]{0}', space=vmem, size = 0x20000, scoped, tag = 'input window, operand 1, single buffered']
    #allocation6 [shape = 's32[1]{0}', space=sflag, size = 0x4, scoped, tag = 'scoped memory for tpu_custom_call.1']
    #allocation7 [shape = 'u8[65536]{0}', space=vmem, size = 0x10000, scoped, tag = 'input window, operand 3, single buffered']
    #allocation8 [shape = 'u8[131072]{0}', space=vmem, size = 0x20000, scoped, tag = 'input window, operand 5, single buffered']
    #allocation9 [shape = 's32[1]{0}', space=sflag, size = 0x4, scoped, tag = 'scoped memory for tpu_custom_call.1']
    #allocation10 [shape = 'u8[8192]{0}', space=vmem, size = 0x2000, scoped, tag = 'output window, operand 0, single buffered']
    %12 = vsyncpa [#allocation3], 0
    %13 = vsyncpa [#allocation6], 0
    %14 = vsyncpa [#allocation9], 0
    %15 = vsyncpa [#allocation4], 0
    // Predicated region
    $region2: #{tpu_custom_call.1} parent=1 // pred_check
      _
    $region3: #{tpu_custom_call.1} parent=1 // pred_check_branch
      %17 = sbr.rel (0) target = $region5
    $region4: #{tpu_custom_call.1} parent=1 // pred_region
      %s19 = ssub.s32 256, 256
      %20 = vsyncadd [#allocation3], %s19
      %s22 = sshll.u32 [#allocation2], 4
      %s23 = int_to_ptr.vmem [resolvable:$true] %s22
      %25 = dma.hbm_to_vmem [thread:$0]  %s0, 256, %s23, [#allocation3]
    $region5: #{tpu_custom_call.1} parent=1 // pred_fallthru
      _
    // Predicated region
    $region6: #{tpu_custom_call.1} parent=1 // pred_check
      _
    $region7: #{tpu_custom_call.1} parent=1 // pred_check_branch
      %27 = sbr.rel (0) target = $region9
    $region8: #{tpu_custom_call.1} parent=1 // pred_region
      %s29 = ssub.s32 4096, 4096
      %30 = vsyncadd [#allocation6], %s29
      %s31 = sshll.u32 [#allocation5], 4
      %s32 = int_to_ptr.vmem [resolvable:$true] %s31
      %37 = dma.hbm_to_vmem [thread:$0]  %s1, 4096, %s32, [#allocation6], 128, 128, 8
    $region9: #{tpu_custom_call.1} parent=1 // pred_fallthru
      _
    // Predicated region
    $region10: #{tpu_custom_call.1} parent=1 // pred_check
      _
    $region11: #{tpu_custom_call.1} parent=1 // pred_check_branch
      %39 = sbr.rel (0) target = $region13
    $region12: #{tpu_custom_call.1} parent=1 // pred_region
      _
    $region13: #{tpu_custom_call.1} parent=1 // pred_fallthru
      _
    // Predicated region
    $region14: #{tpu_custom_call.1} parent=1 // pred_check
      _
    $region15: #{tpu_custom_call.1} parent=1 // pred_check_branch
      %41 = sbr.rel (0) target = $region17
    $region16: #{tpu_custom_call.1} parent=1 // pred_region
      %s43 = ssub.s32 2048, 2048
      %44 = vsyncadd [#allocation6], %s43
      %s45 = sshll.u32 [#allocation7], 4
      %s46 = int_to_ptr.vmem [resolvable:$true] %s45
      %51 = dma.hbm_to_vmem [thread:$0]  %s3, 2048, %s46, [#allocation6], 128, 128, 8
    $region17: #{tpu_custom_call.1} parent=1 // pred_fallthru
      _
    // Predicated region
    $region18: #{tpu_custom_call.1} parent=1 // pred_check
      _
    $region19: #{tpu_custom_call.1} parent=1 // pred_check_branch
      %53 = sbr.rel (0) target = $region21
    $region20: #{tpu_custom_call.1} parent=1 // pred_region
      _
    $region21: #{tpu_custom_call.1} parent=1 // pred_fallthru
      _
    // Predicated region
    $region22: #{tpu_custom_call.1} parent=1 // pred_check
      _
    $region23: #{tpu_custom_call.1} parent=1 // pred_check_branch
      %55 = sbr.rel (0) target = $region25
    $region24: #{tpu_custom_call.1} parent=1 // pred_region
      %s57 = ssub.s32 4096, 4096
      %58 = vsyncadd [#allocation9], %s57
      %s59 = sshll.u32 [#allocation8], 4
      %s60 = int_to_ptr.vmem [resolvable:$true] %s59
      %65 = dma.hbm_to_vmem [thread:$0]  %s5, 4096, %s60, [#allocation9], 256, 256, 16
    $region25: #{tpu_custom_call.1} parent=1 // pred_fallthru
      _
    // Predicated region
    $region26: #{tpu_custom_call.1} parent=1 // pred_check
      _
    $region27: #{tpu_custom_call.1} parent=1 // pred_check_branch
      %67 = sbr.rel (0) target = $region29
    $region28: #{tpu_custom_call.1} parent=1 // pred_region
      _
    $region29: #{tpu_custom_call.1} parent=1 // pred_fallthru
      _
    // Predicated region
    $region30: #{tpu_custom_call.1} parent=1 // pred_check
      _
    $region31: #{tpu_custom_call.1} parent=1 // pred_check_branch
      %69 = sbr.rel (0) target = $region33
    $region32: #{tpu_custom_call.1} parent=1 // pred_region
      %70 = dma.done [#allocation3], 256
    $region33: #{tpu_custom_call.1} parent=1 // pred_fallthru
      _
    // Predicated region
    $region34: #{tpu_custom_call.1} parent=1 // pred_check
      _
    $region35: #{tpu_custom_call.1} parent=1 // pred_check_branch
      %72 = sbr.rel (0) target = $region37
    $region36: #{tpu_custom_call.1} parent=1 // pred_region
      %73 = dma.done [#allocation6], 4096
    $region37: #{tpu_custom_call.1} parent=1 // pred_fallthru
      _
    // Predicated region
    $region38: #{tpu_custom_call.1} parent=1 // pred_check
      _
    $region39: #{tpu_custom_call.1} parent=1 // pred_check_branch
      %75 = sbr.rel (0) target = $region41
    $region40: #{tpu_custom_call.1} parent=1 // pred_region
      %76 = dma.done [#allocation6], 2048
    $region41: #{tpu_custom_call.1} parent=1 // pred_fallthru
      _
    // Predicated region
    $region42: #{tpu_custom_call.1} parent=1 // pred_check
      _
    $region43: #{tpu_custom_call.1} parent=1 // pred_check_branch
      %78 = sbr.rel (0) target = $region45
    $region44: #{tpu_custom_call.1} parent=1 // pred_region
      %79 = dma.done [#allocation9], 4096
    $region45: #{tpu_custom_call.1} parent=1 // pred_fallthru
      _
    %v80 = vld [vmem:[#allocation2] sm:$0xff]
    %v81 = vld [vmem:[#allocation2 + $0x8] sm:$0xff]
    %v82 = vld [vmem:[#allocation5] sm:$0xff]
    %v83 = vld [vmem:[#allocation5 + $0x8] sm:$0xff]
    %v84 = vld [vmem:[#allocation5 + $0x10] sm:$0xff]
    %v85 = vld [vmem:[#allocation5 + $0x18] sm:$0xff]
    %v86 = vld [vmem:[#allocation5 + $0x20] sm:$0xff]
    %v87 = vld [vmem:[#allocation5 + $0x28] sm:$0xff]
    %v88 = vld [vmem:[#allocation5 + $0x30] sm:$0xff]
    %v89 = vld [vmem:[#allocation5 + $0x38] sm:$0xff]
    %v90 = vld [vmem:[#allocation5 + $0x40] sm:$0xff]
    %v91 = vld [vmem:[#allocation5 + $0x48] sm:$0xff]
    %v92 = vld [vmem:[#allocation5 + $0x50] sm:$0xff]
    %v93 = vld [vmem:[#allocation5 + $0x58] sm:$0xff]
    %v94 = vld [vmem:[#allocation5 + $0x60] sm:$0xff]
    %v95 = vld [vmem:[#allocation5 + $0x68] sm:$0xff]
    %v96 = vld [vmem:[#allocation5 + $0x70] sm:$0xff]
    %v97 = vld [vmem:[#allocation5 + $0x78] sm:$0xff]
    %v98 = vld [vmem:[#allocation5 + $0x80] sm:$0xff]
    %v99 = vld [vmem:[#allocation5 + $0x88] sm:$0xff]
    %v100 = vld [vmem:[#allocation5 + $0x90] sm:$0xff]
    %v101 = vld [vmem:[#allocation5 + $0x98] sm:$0xff]
    %v102 = vld [vmem:[#allocation5 + $0xa0] sm:$0xff]
    %v103 = vld [vmem:[#allocation5 + $0xa8] sm:$0xff]
    %v104 = vld [vmem:[#allocation5 + $0xb0] sm:$0xff]
    %v105 = vld [vmem:[#allocation5 + $0xb8] sm:$0xff]
    %v106 = vld [vmem:[#allocation5 + $0xc0] sm:$0xff]
    %v107 = vld [vmem:[#allocation5 + $0xc8] sm:$0xff]
    %v108 = vld [vmem:[#allocation5 + $0xd0] sm:$0xff]
    %v109 = vld [vmem:[#allocation5 + $0xd8] sm:$0xff]
    %v110 = vld [vmem:[#allocation5 + $0xe0] sm:$0xff]
    %v111 = vld [vmem:[#allocation5 + $0xe8] sm:$0xff]
    %v112 = vld [vmem:[#allocation5 + $0xf0] sm:$0xff]
    %v113 = vld [vmem:[#allocation5 + $0xf8] sm:$0xff]
    %v114 = vld [vmem:[%s2] sm:$0x1]
    %v116 = vlaneseq
    %v117 = vshrl.u32 %v116, 7
    %v118 = vsub.s32 0, %v117
    %v119 = vrot.slane %v114, %v118
    %121 = vmatprep.subr.mxu0 0.0
    %122 = vmatpush1.msra.mxu0 %v82
    %123 = vmatprep.subr.mxu0 0.0
    %124 = vmatpush1.msra.mxu0 %v83
    %125 = vmatprep.subr.mxu0 0.0
    %126 = vmatpush1.msra.mxu0 %v84
    %127 = vmatprep.subr.mxu0 0.0
    %128 = vmatpush1.msra.mxu0 %v85
    %129 = vmatprep.subr.mxu0 0.0
    %130 = vmatpush1.msra.mxu0 %v86
    %131 = vmatprep.subr.mxu0 0.0
    %132 = vmatpush1.msra.mxu0 %v87
    %133 = vmatprep.subr.mxu0 0.0
    %134 = vmatpush1.msra.mxu0 %v88
    %135 = vmatprep.subr.mxu0 0.0
    %136 = vmatpush1.msra.mxu0 %v89
    %137 = vmatprep.subr.mxu0 0.0
    %138 = vmatpush1.msra.mxu0 %v90
    %139 = vmatprep.subr.mxu0 0.0
    %140 = vmatpush1.msra.mxu0 %v91
    %141 = vmatprep.subr.mxu0 0.0
    %142 = vmatpush1.msra.mxu0 %v92
    %143 = vmatprep.subr.mxu0 0.0
    %144 = vmatpush1.msra.mxu0 %v93
    %145 = vmatprep.subr.mxu0 0.0
    %146 = vmatpush1.msra.mxu0 %v94
    %147 = vmatprep.subr.mxu0 0.0
    %148 = vmatpush1.msra.mxu0 %v95
    %149 = vmatprep.subr.mxu0 0.0
    %150 = vmatpush1.msra.mxu0 %v96
    %151 = vmatprep.subr.mxu0 0.0
    %152 = vmatpush1.msra.mxu0 %v97
    %153 = vmatprep.subr.mxu0 0.0
    %154 = vmatpush1.msra.mxu0 %v98
    %155 = vmatprep.subr.mxu0 0.0
    %156 = vmatpush1.msra.mxu0 %v99
    %157 = vmatprep.subr.mxu0 0.0
    %158 = vmatpush1.msra.mxu0 %v100
    %159 = vmatprep.subr.mxu0 0.0
    %160 = vmatpush1.msra.mxu0 %v101
    %161 = vmatprep.subr.mxu0 0.0
    %162 = vmatpush1.msra.mxu0 %v102
    %163 = vmatprep.subr.mxu0 0.0
    %164 = vmatpush1.msra.mxu0 %v103
    %165 = vmatprep.subr.mxu0 0.0
    %166 = vmatpush1.msra.mxu0 %v104
    %167 = vmatprep.subr.mxu0 0.0
    %168 = vmatpush1.msra.mxu0 %v105
    %169 = vmatprep.subr.mxu0 0.0
    %170 = vmatpush1.msra.mxu0 %v106
    %171 = vmatprep.subr.mxu0 0.0
    %172 = vmatpush1.msra.mxu0 %v107
    %173 = vmatprep.subr.mxu0 0.0
    %174 = vmatpush1.msra.mxu0 %v108
    %175 = vmatprep.subr.mxu0 0.0
    %176 = vmatpush1.msra.mxu0 %v109
    %177 = vmatprep.subr.mxu0 0.0
    %178 = vmatpush1.msra.mxu0 %v110
    %179 = vmatprep.subr.mxu0 0.0
    %180 = vmatpush1.msra.mxu0 %v111
    %181 = vmatprep.subr.mxu0 0.0
    %182 = vmatpush1.msra.mxu0 %v112
    %183 = vmatprep.subr.mxu0 0.0
    %184 = vmatpush1.msra.mxu0 %v113
    %185 = vmatprep.mubr.f32.mxu0 %v81
    %186 = vmatmul.mubr.f32.gmra.mrb[0].mxu0 %v80
    %v187 = vpop.f32.mrb[0].mxu0
    %v188 = vadd.f32 %v119, %v187
    %v189 = vpop.f32.mrb[0].mxu0
    %190 = vdwg.mxu0
    %v191 = vmax.f32 %v188, 0.0
    %v192 = vld [vmem:[#allocation7] sm:$0xff]
    %v193 = vld [vmem:[#allocation7 + $0x8] sm:$0xff]
    %v194 = vld [vmem:[#allocation7 + $0x10] sm:$0xff]
    %v195 = vld [vmem:[#allocation7 + $0x18] sm:$0xff]
    %v196 = vld [vmem:[#allocation7 + $0x20] sm:$0xff]
    %v197 = vld [vmem:[#allocation7 + $0x28] sm:$0xff]
    %v198 = vld [vmem:[#allocation7 + $0x30] sm:$0xff]
    %v199 = vld [vmem:[#allocation7 + $0x38] sm:$0xff]
    %v200 = vld [vmem:[#allocation7 + $0x40] sm:$0xff]
    %v201 = vld [vmem:[#allocation7 + $0x48] sm:$0xff]
    %v202 = vld [vmem:[#allocation7 + $0x50] sm:$0xff]
    %v203 = vld [vmem:[#allocation7 + $0x58] sm:$0xff]
    %v204 = vld [vmem:[#allocation7 + $0x60] sm:$0xff]
    %v205 = vld [vmem:[#allocation7 + $0x68] sm:$0xff]
    %v206 = vld [vmem:[#allocation7 + $0x70] sm:$0xff]
    %v207 = vld [vmem:[#allocation7 + $0x78] sm:$0xff]
    %v208 = vld [vmem:[%s4] sm:$0x1]
    %v210 = vlaneseq
    %v211 = vshrl.u32 %v210, 7
    %v212 = vsub.s32 0, %v211
    %v213 = vrot.slane %v208, %v212
    %215 = vmatprep.subr.mxu0 0.0
    %216 = vmatpush1.msra.mxu0 %v192
    %217 = vmatprep.subr.mxu0 0.0
    %218 = vmatpush1.msra.mxu0 %v193
    %219 = vmatprep.subr.mxu0 0.0
    %220 = vmatpush1.msra.mxu0 %v194
    %221 = vmatprep.subr.mxu0 0.0
    %222 = vmatpush1.msra.mxu0 %v195
    %223 = vmatprep.subr.mxu0 0.0
    %224 = vmatpush1.msra.mxu0 %v196
    %225 = vmatprep.subr.mxu0 0.0
    %226 = vmatpush1.msra.mxu0 %v197
    %227 = vmatprep.subr.mxu0 0.0
    %228 = vmatpush1.msra.mxu0 %v198
    %229 = vmatprep.subr.mxu0 0.0
    %230 = vmatpush1.msra.mxu0 %v199
    %231 = vmatprep.subr.mxu0 0.0
    %232 = vmatpush1.msra.mxu0 %v200
    %233 = vmatprep.subr.mxu0 0.0
    %234 = vmatpush1.msra.mxu0 %v201
    %235 = vmatprep.subr.mxu0 0.0
    %236 = vmatpush1.msra.mxu0 %v202
    %237 = vmatprep.subr.mxu0 0.0
    %238 = vmatpush1.msra.mxu0 %v203
    %239 = vmatprep.subr.mxu0 0.0
    %240 = vmatpush1.msra.mxu0 %v204
    %241 = vmatprep.subr.mxu0 0.0
    %242 = vmatpush1.msra.mxu0 %v205
    %243 = vmatprep.subr.mxu0 0.0
    %244 = vmatpush1.msra.mxu0 %v206
    %245 = vmatprep.subr.mxu0 0.0
    %246 = vmatpush1.msra.mxu0 %v207
    %247 = vmatprep.subr.mxu0 0.0
    %248 = vmatpush1.msra.mxu0 0.0
    %249 = vmatprep.subr.mxu0 0.0
    %250 = vmatpush1.msra.mxu0 0.0
    %251 = vmatprep.subr.mxu0 0.0
    %252 = vmatpush1.msra.mxu0 0.0
    %253 = vmatprep.subr.mxu0 0.0
    %254 = vmatpush1.msra.mxu0 0.0
    %255 = vmatprep.subr.mxu0 0.0
    %256 = vmatpush1.msra.mxu0 0.0
    %257 = vmatprep.subr.mxu0 0.0
    %258 = vmatpush1.msra.mxu0 0.0
    %259 = vmatprep.subr.mxu0 0.0
    %260 = vmatpush1.msra.mxu0 0.0
    %261 = vmatprep.subr.mxu0 0.0
    %262 = vmatpush1.msra.mxu0 0.0
    %263 = vmatprep.subr.mxu0 0.0
    %264 = vmatpush1.msra.mxu0 0.0
    %265 = vmatprep.subr.mxu0 0.0
    %266 = vmatpush1.msra.mxu0 0.0
    %267 = vmatprep.subr.mxu0 0.0
    %268 = vmatpush1.msra.mxu0 0.0
    %269 = vmatprep.subr.mxu0 0.0
    %270 = vmatpush1.msra.mxu0 0.0
    %271 = vmatprep.subr.mxu0 0.0
    %272 = vmatpush1.msra.mxu0 0.0
    %273 = vmatprep.subr.mxu0 0.0
    %274 = vmatpush1.msra.mxu0 0.0
    %275 = vmatprep.subr.mxu0 0.0
    %276 = vmatpush1.msra.mxu0 0.0
    %277 = vmatprep.subr.mxu0 0.0
    %278 = vmatpush1.msra.mxu0 0.0
    %279 = vmatprep.mubr.f32.mxu0 0.0
    %280 = vmatmul.mubr.f32.gmra.mrb[0].mxu0 %v191
    %v281 = vpop.f32.mrb[0].mxu0
    %v282 = vadd.f32 %v213, %v281
    %v283 = vpop.f32.mrb[0].mxu0
    %284 = vdwg.mxu0
    %v285 = vmax.f32 %v282, 0.0
    %v286 = vld [vmem:[#allocation8] sm:$0xff]
    %v287 = vld [vmem:[#allocation8 + $0x8] sm:$0xff]
    %v288 = vld [vmem:[#allocation8 + $0x10] sm:$0xff]
    %v289 = vld [vmem:[#allocation8 + $0x18] sm:$0xff]
    %v290 = vld [vmem:[#allocation8 + $0x20] sm:$0xff]
    %v291 = vld [vmem:[#allocation8 + $0x28] sm:$0xff]
    %v292 = vld [vmem:[#allocation8 + $0x30] sm:$0xff]
    %v293 = vld [vmem:[#allocation8 + $0x38] sm:$0xff]
    %v294 = vld [vmem:[#allocation8 + $0x40] sm:$0xff]
    %v295 = vld [vmem:[#allocation8 + $0x48] sm:$0xff]
    %v296 = vld [vmem:[#allocation8 + $0x50] sm:$0xff]
    %v297 = vld [vmem:[#allocation8 + $0x58] sm:$0xff]
    %v298 = vld [vmem:[#allocation8 + $0x60] sm:$0xff]
    %v299 = vld [vmem:[#allocation8 + $0x68] sm:$0xff]
    %v300 = vld [vmem:[#allocation8 + $0x70] sm:$0xff]
    %v301 = vld [vmem:[#allocation8 + $0x78] sm:$0xff]
    %v302 = vld [vmem:[#allocation8 + $0x80] sm:$0xff]
    %v303 = vld [vmem:[#allocation8 + $0x88] sm:$0xff]
    %v304 = vld [vmem:[#allocation8 + $0x90] sm:$0xff]
    %v305 = vld [vmem:[#allocation8 + $0x98] sm:$0xff]
    %v306 = vld [vmem:[#allocation8 + $0xa0] sm:$0xff]
    %v307 = vld [vmem:[#allocation8 + $0xa8] sm:$0xff]
    %v308 = vld [vmem:[#allocation8 + $0xb0] sm:$0xff]
    %v309 = vld [vmem:[#allocation8 + $0xb8] sm:$0xff]
    %v310 = vld [vmem:[#allocation8 + $0xc0] sm:$0xff]
    %v311 = vld [vmem:[#allocation8 + $0xc8] sm:$0xff]
    %v312 = vld [vmem:[#allocation8 + $0xd0] sm:$0xff]
    %v313 = vld [vmem:[#allocation8 + $0xd8] sm:$0xff]
    %v314 = vld [vmem:[#allocation8 + $0xe0] sm:$0xff]
    %v315 = vld [vmem:[#allocation8 + $0xe8] sm:$0xff]
    %v316 = vld [vmem:[#allocation8 + $0xf0] sm:$0xff]
    %v317 = vld [vmem:[#allocation8 + $0xf8] sm:$0xff]
    %v318 = vld [vmem:[%s6] sm:$0x3]
    %v320 = vlaneseq
    %v321 = vshrl.u32 %v320, 7
    %v322 = vsub.s32 0, %v321
    %v323 = vrot.slane %v318, %v322
    %v324 = vlaneseq
    %v325 = vshrl.u32 %v324, 7
    %v326 = vsub.s32 1, %v325
    %v327 = vrot.slane %v318, %v326
    %330 = vmatprep.subr.mxu0 %v287
    %331 = vmatpush1.msra.mxu0 %v286
    %332 = vmatprep.subr.mxu0 %v289
    %333 = vmatpush1.msra.mxu0 %v288
    %334 = vmatprep.subr.mxu0 %v291
    %335 = vmatpush1.msra.mxu0 %v290
    %336 = vmatprep.subr.mxu0 %v293
    %337 = vmatpush1.msra.mxu0 %v292
    %338 = vmatprep.subr.mxu0 %v295
    %339 = vmatpush1.msra.mxu0 %v294
    %340 = vmatprep.subr.mxu0 %v297
    %341 = vmatpush1.msra.mxu0 %v296
    %342 = vmatprep.subr.mxu0 %v299
    %343 = vmatpush1.msra.mxu0 %v298
    %344 = vmatprep.subr.mxu0 %v301
    %345 = vmatpush1.msra.mxu0 %v300
    %346 = vmatprep.subr.mxu0 %v303
    %347 = vmatpush1.msra.mxu0 %v302
    %348 = vmatprep.subr.mxu0 %v305
    %349 = vmatpush1.msra.mxu0 %v304
    %350 = vmatprep.subr.mxu0 %v307
    %351 = vmatpush1.msra.mxu0 %v306
    %352 = vmatprep.subr.mxu0 %v309
    %353 = vmatpush1.msra.mxu0 %v308
    %354 = vmatprep.subr.mxu0 %v311
    %355 = vmatpush1.msra.mxu0 %v310
    %356 = vmatprep.subr.mxu0 %v313
    %357 = vmatpush1.msra.mxu0 %v312
    %358 = vmatprep.subr.mxu0 %v315
    %359 = vmatpush1.msra.mxu0 %v314
    %360 = vmatprep.subr.mxu0 %v317
    %361 = vmatpush1.msra.mxu0 %v316
    %362 = vmatprep.subr.mxu0 0.0
    %363 = vmatpush1.msra.mxu0 0.0
    %364 = vmatprep.subr.mxu0 0.0
    %365 = vmatpush1.msra.mxu0 0.0
    %366 = vmatprep.subr.mxu0 0.0
    %367 = vmatpush1.msra.mxu0 0.0
    %368 = vmatprep.subr.mxu0 0.0
    %369 = vmatpush1.msra.mxu0 0.0
    %370 = vmatprep.subr.mxu0 0.0
    %371 = vmatpush1.msra.mxu0 0.0
    %372 = vmatprep.subr.mxu0 0.0
    %373 = vmatpush1.msra.mxu0 0.0
    %374 = vmatprep.subr.mxu0 0.0
    %375 = vmatpush1.msra.mxu0 0.0
    %376 = vmatprep.subr.mxu0 0.0
    %377 = vmatpush1.msra.mxu0 0.0
    %378 = vmatprep.subr.mxu0 0.0
    %379 = vmatpush1.msra.mxu0 0.0
    %380 = vmatprep.subr.mxu0 0.0
    %381 = vmatpush1.msra.mxu0 0.0
    %382 = vmatprep.subr.mxu0 0.0
    %383 = vmatpush1.msra.mxu0 0.0
    %384 = vmatprep.subr.mxu0 0.0
    %385 = vmatpush1.msra.mxu0 0.0
    %386 = vmatprep.subr.mxu0 0.0
    %387 = vmatpush1.msra.mxu0 0.0
    %388 = vmatprep.subr.mxu0 0.0
    %389 = vmatpush1.msra.mxu0 0.0
    %390 = vmatprep.subr.mxu0 0.0
    %391 = vmatpush1.msra.mxu0 0.0
    %392 = vmatprep.subr.mxu0 0.0
    %393 = vmatpush1.msra.mxu0 0.0
    %394 = vmatprep.mubr.f32.mxu0 0.0
    %395 = vmatmul.mubr.f32.gmra.mrb[0].mxu0 %v285
    %v396 = vpop.f32.mrb[0].mxu0
    %v397 = vadd.f32 %v323, %v396
    %v398 = vpop.f32.mrb[0].mxu0
    %v399 = vadd.f32 %v327, %v398
    %400 = vdwg.mxu0
    %401 = vst [vmem:[#allocation10] sm:$0xff] %v397
    %402 = vst [vmem:[#allocation10 + $0x8] sm:$0xff] %v399
    // Predicated region
    $region46: #{tpu_custom_call.1} parent=1 // pred_check
      _
    $region47: #{tpu_custom_call.1} parent=1 // pred_check_branch
      %404 = sbr.rel (0) target = $region49
    $region48: #{tpu_custom_call.1} parent=1 // pred_region
      %s406 = ssub.s32 256, 256
      %407 = vsyncadd [#allocation4], %s406
      %s409 = sshll.u32 [#allocation10], 4
      %s410 = int_to_ptr.vmem [resolvable:$true] %s409
      %412 = dma.vmem_to_hbm [thread:$0]  %s410, 256, %s7, [#allocation4]
    $region49: #{tpu_custom_call.1} parent=1 // pred_fallthru
      _
    // Predicated region
    $region50: #{tpu_custom_call.1} parent=1 // pred_check
      _
    $region51: #{tpu_custom_call.1} parent=1 // pred_check_branch
      %414 = sbr.rel (0) target = $region53
    $region52: #{tpu_custom_call.1} parent=1 // pred_region
      %415 = dma.done [#allocation4], 256
    $region53: #{tpu_custom_call.1} parent=1 // pred_fallthru
      _
    %416 = vsyncpa [#allocation3], 1
    %417 = vsyncpa [#allocation6], 1
    %418 = vsyncpa [#allocation9], 1
    %419 = vsyncpa [#allocation4], 1

</llo_original>
